<compile_context>
chip_gen: v7x
topology: tpu7x:2x2x1
jax: 0.10.0
libtpu: 0.0.40
codegen_flags: <defaults>
</compile_context>

<pallas_src>
import functools

import jax
import jax.numpy as jnp
from jax.experimental import pallas as pl
from jax.experimental.pallas import tpu as pltpu

D_MODEL = 32
FF_SIZE = 64
LN_EPS = 1e-5


def ffn_kernel(x_ref, mred_ref, w1_ref, b1_ref, w2_ref, b2_ref, o_ref):
    # x_ref: (tm, d_packed) tile; each 128-lane row holds PACK tokens.
    x = x_ref[...].astype(jnp.float32)
    mred = mred_ref[...]  # (d_packed, d_packed) block-diag ones/d_model

    # --- LayerNorm per token group, reductions done on the MXU ---
    mean = jnp.dot(x, mred, preferred_element_type=jnp.float32)
    cent = x - mean
    var = jnp.dot(cent * cent, mred, preferred_element_type=jnp.float32)
    xn = cent * jax.lax.rsqrt(var + LN_EPS)
    # (gamma/beta already folded into w1/b1 by the wrapper)

    # --- dense1 + ReLU (block-diagonal weights, full-width MXU) ---
    h = jnp.dot(xn, w1_ref[...], preferred_element_type=jnp.float32) + b1_ref[...]
    h = jnp.maximum(h, 0.0)

    # (dropout == identity in eval mode)

    # --- dense2 ---
    y = jnp.dot(h, w2_ref[...], preferred_element_type=jnp.float32) + b2_ref[...]

    # (dropout == identity in eval mode)

    # --- residual add against the f32 upcast of x ---
    o_ref[...] = (y + x).astype(o_ref.dtype)


def _pick_tm(n_rows: int, requested: int) -> int:
    """Pick a packed-row tile size.

    - Single block when everything fits in one requested tile (a block equal
      to the full dim is legal even if not a multiple of 8).
    - Otherwise balance block sizes across the grid (grid length >= 2, which
      lets dimension_semantics=("parallel",) shard across v7x's 2 TCs) and
      round up to a multiple of 8 sublanes.  Partial tail blocks are fine:
      rows are independent and padded rows are discarded on writeback.
    """
    if n_rows <= requested:
        return n_rows
    n_blocks = -(-n_rows // requested)
    tm = -(-n_rows // n_blocks)
    return -(-tm // 8) * 8


def _block_diag(w, reps):
    """Block-diagonal expansion: (din, dout) -> (reps*din, reps*dout)."""
    din, dout = w.shape
    eye = jnp.eye(reps, dtype=w.dtype)
    return (eye[:, None, :, None] * w[None, :, None, :]).reshape(
        reps * din, reps * dout)


@functools.partial(jax.jit, static_argnames=("tm",))
def feed_forward_module(x, gamma, beta, w1, b1, w2, b2, *, tm=2048):
    """x: (batch, seq, d_model). Returns same shape/dtype.

    w1: (d_model, ff_size), w2: (ff_size, d_model) (pre-transposed vs PyTorch).
    """
    batch, seq, d_model = x.shape
    ff_size = w1.shape[1]
    n = batch * seq

    # How many tokens share one 128-lane row.
    pack = 128 // d_model if (d_model <= 128 and 128 % d_model == 0) else 1
    d_packed = pack * d_model
    ff_packed = pack * ff_size

    # --- host-side weight prep (tiny; traced/fused by XLA) ---
    # Fold LN affine into dense1.
    w1_f = (gamma.astype(jnp.float32)[:, None] * w1.astype(jnp.float32))
    b1_f = beta.astype(jnp.float32) @ w1.astype(jnp.float32) + b1.astype(jnp.float32)
    # Block-diagonal expansion for the lane-packed layout.
    w1_big = _block_diag(w1_f, pack)                              # (dp, fp)
    w2_big = _block_diag(w2.astype(jnp.float32), pack)            # (fp, dp)
    b1_big = jnp.tile(b1_f, pack).reshape(1, ff_packed)           # (1, fp)
    b2_big = jnp.tile(b2.astype(jnp.float32), pack).reshape(1, d_packed)
    # Block-diagonal ones/d_model matrix: per-token mean via MXU.
    mred = _block_diag(
        jnp.full((d_model, d_model), 1.0 / d_model, jnp.float32), pack)

    # --- pack tokens into 128-lane rows (pad row count to a multiple of pack) ---
    x2d = x.reshape(n, d_model)
    n_pad = -(-n // pack) * pack
    if n_pad != n:
        x2d = jnp.pad(x2d, ((0, n_pad - n), (0, 0)))
    n_rows = n_pad // pack
    xp = x2d.reshape(n_rows, d_packed)

    tm_eff = _pick_tm(n_rows, tm)
    grid = (pl.cdiv(n_rows, tm_eff),)

    # Constant operands map to block (0,0) every step -> DMA'd once, resident.
    const = lambda shape: pl.BlockSpec(shape, lambda i: (0, 0))

    outp = pl.pallas_call(
        ffn_kernel,
        out_shape=jax.ShapeDtypeStruct((n_rows, d_packed), x.dtype),
        grid_spec=pltpu.PrefetchScalarGridSpec(
            num_scalar_prefetch=0,
            grid=grid,
            in_specs=[
                pl.BlockSpec((tm_eff, d_packed), lambda i: (i, 0)),  # x tile
                const((d_packed, d_packed)),                         # LN reduce
                const((d_packed, ff_packed)),                        # W1_big
                const((1, ff_packed)),                               # b1_big
                const((ff_packed, d_packed)),                        # W2_big
                const((1, d_packed)),                                # b2_big
            ],
            out_specs=pl.BlockSpec((tm_eff, d_packed), lambda i: (i, 0)),
        ),
        compiler_params=pltpu.CompilerParams(
            # Packed-row tiles are independent -> shard across TensorCores.
            dimension_semantics=("parallel",)
        ),
    )(xp, mred, w1_big, b1_big, w2_big, b2_big)

    out2d = outp.reshape(n_pad, d_model)[:n]
    return out2d.reshape(batch, seq, d_model)


def reference(x, gamma, beta, w1, b1, w2, b2):
    """Plain-JAX reference mirroring the PyTorch forward (eval mode)."""
    xf = x.astype(jnp.float32)
    mean = jnp.mean(xf, axis=-1, keepdims=True)
    var = jnp.mean((xf - mean) ** 2, axis=-1, keepdims=True)
    xn = (xf - mean) / jnp.sqrt(var + LN_EPS) * gamma + beta
    h = jnp.maximum(xn @ w1 + b1, 0.0)
    y = h @ w2 + b2
    return (y + xf).astype(x.dtype)


if __name__ == "__main__":
    key = jax.random.PRNGKey(0)
    kg, kb, kw1, kb1, kw2, kb2, kx1, kx2, kx3 = jax.random.split(key, 9)

    # LayerNorm params: make them non-trivial to exercise the affine fold.
    gamma = 1.0 + 0.1 * jax.random.normal(kg, (D_MODEL,), jnp.float32)
    beta = 0.1 * jax.random.normal(kb, (D_MODEL,), jnp.float32)

    # Linear params, stored pre-transposed as (in, out) for the kernel.
    bound1 = 1.0 / (D_MODEL ** 0.5)
    bound2 = 1.0 / (FF_SIZE ** 0.5)
    w1 = jax.random.uniform(kw1, (D_MODEL, FF_SIZE), jnp.float32, -bound1, bound1)
    b1 = jax.random.uniform(kb1, (FF_SIZE,), jnp.float32, -bound1, bound1)
    w2 = jax.random.uniform(kw2, (FF_SIZE, D_MODEL), jnp.float32, -bound2, bound2)
    b2 = jax.random.uniform(kb2, (D_MODEL,), jnp.float32, -bound2, bound2)

    # --- Case 1: small shape, single packed block (n=16 -> 4 packed rows) ---
    x = jax.random.normal(kx1, (2, 8, D_MODEL), dtype=jnp.float32)
    out = feed_forward_module(x, gamma, beta, w1, b1, w2, b2)
    jax.block_until_ready(out)
    ref = reference(x, gamma, beta, w1, b1, w2, b2)
    assert out.shape == x.shape and out.dtype == x.dtype
    assert jnp.allclose(out, ref, atol=1e-4, rtol=1e-4), "mismatch (case 1)"

    # --- Case 2: multi-block grid with a partial tail block
    #     (n=200 tokens -> 50 packed rows, tm=16 -> grid length 4) ---
    x2 = jax.random.normal(kx2, (4, 50, D_MODEL), dtype=jnp.float32)
    out2 = feed_forward_module(x2, gamma, beta, w1, b1, w2, b2, tm=16)
    jax.block_until_ready(out2)
    ref2 = reference(x2, gamma, beta, w1, b1, w2, b2)
    assert out2.shape == x2.shape and out2.dtype == x2.dtype
    assert jnp.allclose(out2, ref2, atol=1e-4, rtol=1e-4), "mismatch (case 2)"

    # --- Case 3: token count not divisible by pack (n=21 -> padded to 24) ---
    x3 = jax.random.normal(kx3, (3, 7, D_MODEL), dtype=jnp.float32)
    out3 = feed_forward_module(x3, gamma, beta, w1, b1, w2, b2)
    jax.block_until_ready(out3)
    ref3 = reference(x3, gamma, beta, w1, b1, w2, b2)
    assert out3.shape == x3.shape and out3.dtype == x3.dtype
    assert jnp.allclose(out3, ref3, atol=1e-4, rtol=1e-4), "mismatch (case 3)"

    print("KERNEL_OK")
</pallas_src>

<mosaic_0001>
module attributes {stable_mosaic.version = 11 : i64} {
  func.func @ffn_kernel(%arg0: i32, %arg1: memref<4x128xf32, #tpu.memory_space<vmem>>, %arg2: memref<128x128xf32, #tpu.memory_space<vmem>>, %arg3: memref<128x256xf32, #tpu.memory_space<vmem>>, %arg4: memref<1x256xf32, #tpu.memory_space<vmem>>, %arg5: memref<256x128xf32, #tpu.memory_space<vmem>>, %arg6: memref<1x128xf32, #tpu.memory_space<vmem>>, %arg7: memref<4x128xf32, #tpu.memory_space<vmem>>) attributes {dimension_semantics = [#tpu.dimension_semantics<parallel>], iteration_bounds = array<i64: 1>, scalar_prefetch = 0 : i64, scratch_operands = 0 : i64, tpu.core_type = #tpu.core_type<tc>, window_params = [{transform_indices = @transform_0, window_bounds = array<i64: 4, 128>}, {pipeline_mode = #tpu.pipeline_mode<synchronous>, transform_indices = @transform_1, window_bounds = array<i64: 128, 128>}, {pipeline_mode = #tpu.pipeline_mode<synchronous>, transform_indices = @transform_2, window_bounds = array<i64: 128, 256>}, {pipeline_mode = #tpu.pipeline_mode<synchronous>, transform_indices = @transform_3, window_bounds = array<i64: 1, 256>}, {pipeline_mode = #tpu.pipeline_mode<synchronous>, transform_indices = @transform_4, window_bounds = array<i64: 256, 128>}, {pipeline_mode = #tpu.pipeline_mode<synchronous>, transform_indices = @transform_5, window_bounds = array<i64: 1, 128>}, {transform_indices = @transform_6, window_bounds = array<i64: 4, 128>}]} {
    %c0 = arith.constant 0 : index
    %c0_0 = arith.constant 0 : index
    %0 = vector.load %arg1[%c0, %c0_0] : memref<4x128xf32, #tpu.memory_space<vmem>>, vector<4x128xf32>
    %c0_1 = arith.constant 0 : index
    %c0_2 = arith.constant 0 : index
    %1 = vector.load %arg2[%c0_1, %c0_2] : memref<128x128xf32, #tpu.memory_space<vmem>>, vector<128x128xf32>
    %cst = arith.constant dense<0.000000e+00> : vector<4x128xf32>
    %2 = tpu.matmul %0, %1, %cst {dimension_numbers = #tpu.dot_dimension_numbers<[1], [0], [0], [1], [0, 0, 1, 1], [], []>} : vector<4x128xf32>, vector<128x128xf32>, vector<4x128xf32> -> vector<4x128xf32>
    %3 = arith.subf %0, %2 : vector<4x128xf32>
    %4 = arith.mulf %3, %3 : vector<4x128xf32>
    %cst_3 = arith.constant dense<0.000000e+00> : vector<4x128xf32>
    %5 = tpu.matmul %4, %1, %cst_3 {dimension_numbers = #tpu.dot_dimension_numbers<[1], [0], [0], [1], [0, 0, 1, 1], [], []>} : vector<4x128xf32>, vector<128x128xf32>, vector<4x128xf32> -> vector<4x128xf32>
    %cst_4 = arith.constant 9.99999974E-6 : f32
    %6 = vector.broadcast %cst_4 : f32 to vector<4x128xf32>
    %7 = arith.addf %5, %6 : vector<4x128xf32>
    %8 = math.rsqrt %7 : vector<4x128xf32>
    %9 = arith.mulf %3, %8 : vector<4x128xf32>
    %c0_5 = arith.constant 0 : index
    %c0_6 = arith.constant 0 : index
    %10 = vector.load %arg3[%c0_5, %c0_6] : memref<128x256xf32, #tpu.memory_space<vmem>>, vector<128x256xf32>
    %cst_7 = arith.constant dense<0.000000e+00> : vector<4x256xf32>
    %11 = tpu.matmul %9, %10, %cst_7 {dimension_numbers = #tpu.dot_dimension_numbers<[1], [0], [0], [1], [0, 0, 1, 1], [], []>} : vector<4x128xf32>, vector<128x256xf32>, vector<4x256xf32> -> vector<4x256xf32>
    %c0_8 = arith.constant 0 : index
    %c0_9 = arith.constant 0 : index
    %12 = vector.load %arg4[%c0_8, %c0_9] : memref<1x256xf32, #tpu.memory_space<vmem>>, vector<1x256xf32>
    %13 = vector.broadcast %12 : vector<1x256xf32> to vector<4x256xf32>
    %14 = arith.addf %11, %13 : vector<4x256xf32>
    %cst_10 = arith.constant 0.000000e+00 : f32
    %15 = vector.broadcast %cst_10 : f32 to vector<4x256xf32>
    %16 = arith.maximumf %14, %15 : vector<4x256xf32>
    %c0_11 = arith.constant 0 : index
    %c0_12 = arith.constant 0 : index
    %17 = vector.load %arg5[%c0_11, %c0_12] : memref<256x128xf32, #tpu.memory_space<vmem>>, vector<256x128xf32>
    %cst_13 = arith.constant dense<0.000000e+00> : vector<4x128xf32>
    %18 = tpu.matmul %16, %17, %cst_13 {dimension_numbers = #tpu.dot_dimension_numbers<[1], [0], [0], [1], [0, 0, 1, 1], [], []>} : vector<4x256xf32>, vector<256x128xf32>, vector<4x128xf32> -> vector<4x128xf32>
    %c0_14 = arith.constant 0 : index
    %c0_15 = arith.constant 0 : index
    %19 = vector.load %arg6[%c0_14, %c0_15] : memref<1x128xf32, #tpu.memory_space<vmem>>, vector<1x128xf32>
    %20 = vector.broadcast %19 : vector<1x128xf32> to vector<4x128xf32>
    %21 = arith.addf %18, %20 : vector<4x128xf32>
    %22 = arith.addf %21, %0 : vector<4x128xf32>
    %c0_16 = arith.constant 0 : index
    %c0_17 = arith.constant 0 : index
    %23 = vector.load %arg7[%c0_16, %c0_17] : memref<4x128xf32, #tpu.memory_space<vmem>>, vector<4x128xf32>
    tpu.vector_store %arg7[%c0_16, %c0_17], %22 {strides = array<i32>} : memref<4x128xf32, #tpu.memory_space<vmem>>, vector<4x128xf32>,
    return
  }
  func.func @transform_0(%arg0: i32) -> (i32, i32) {
    %c0_i32 = arith.constant 0 : i32
    %c0_i32_0 = arith.constant 0 : i32
    return %arg0, %c0_i32 : i32, i32
  }
  func.func @transform_1(%arg0: i32) -> (i32, i32) {
    %c0_i32 = arith.constant 0 : i32
    %c0_i32_0 = arith.constant 0 : i32
    %c0_i32_1 = arith.constant 0 : i32
    return %c0_i32, %c0_i32_0 : i32, i32
  }
  func.func @transform_2(%arg0: i32) -> (i32, i32) {
    %c0_i32 = arith.constant 0 : i32
    %c0_i32_0 = arith.constant 0 : i32
    %c0_i32_1 = arith.constant 0 : i32
    return %c0_i32, %c0_i32_0 : i32, i32
  }
  func.func @transform_3(%arg0: i32) -> (i32, i32) {
    %c0_i32 = arith.constant 0 : i32
    %c0_i32_0 = arith.constant 0 : i32
    %c0_i32_1 = arith.constant 0 : i32
    return %c0_i32, %c0_i32_0 : i32, i32
  }
  func.func @transform_4(%arg0: i32) -> (i32, i32) {
    %c0_i32 = arith.constant 0 : i32
    %c0_i32_0 = arith.constant 0 : i32
    %c0_i32_1 = arith.constant 0 : i32
    return %c0_i32, %c0_i32_0 : i32, i32
  }
  func.func @transform_5(%arg0: i32) -> (i32, i32) {
    %c0_i32 = arith.constant 0 : i32
    %c0_i32_0 = arith.constant 0 : i32
    %c0_i32_1 = arith.constant 0 : i32
    return %c0_i32, %c0_i32_0 : i32, i32
  }
  func.func @transform_6(%arg0: i32) -> (i32, i32) {
    %c0_i32 = arith.constant 0 : i32
    %c0_i32_0 = arith.constant 0 : i32
    return %arg0, %c0_i32 : i32, i32
  }
}

</mosaic_0001>

<llo_original>
// kernel: tile.13
$region0: #{tile.13}
  #allocation0 [shape = 's32[1]{0}', space=sflag, size = 0x4, scoped, tag = 'scoped memory for tile.13']
  %s0 = inlined_call_operand.vmem [shape: f32[64], index: 0, kind: input, shape index: {}]
  %s1 = inlined_call_operand.vmem [shape: f32[4,64], index: 1, kind: output, shape index: {}]
  // Predicated region
  $region2: #{tile.13} parent=0 // pred_check
    _
  $region3: #{tile.13} parent=0 // pred_check_branch
    %3 = sbr.rel (0) target = $region5
  $region4: #{tile.13} parent=0 // pred_region
    _
  $region5: #{tile.13} parent=0 // pred_fallthru
    _
  %v4 = vld [vmem:[%s0] ss:$0 sm:$0xff]
  %5 = vst [vmem:[%s1] sm:$0xf] %v4

// kernel: tile.14
$region0: #{tile.14}
  %s0 = inlined_call_operand.vmem [shape: f32[4,64], index: 0, kind: input, shape index: {}]
  %s1 = inlined_call_operand.vmem [shape: f32[1,256], index: 1, kind: output, shape index: {}]
  $region1: #{tile.14} parent=0
    #allocation0 [shape = 'u8[8192]{0}', space=vmem, size = 0x2000, scoped, tag = 'scoped mem for output reshape']
    #allocation1 [shape = 'u8[4096]{0}', space=vmem, size = 0x1000, scoped, tag = 'scoped mem for input reshape']
    %s3 = sshllo.u32 0, 4
    %v4 = vld [vmem:[%s0] sm:%s3]
    %5 = vst [vmem:[#allocation1] sm:%s3] %v4
    %s6 = smov 3
    %v7 = vld [vmem:[#allocation1] ss:$2 sm:%s6]
    %vm8 = vcmask 523264
    %9 = vst.msk [vmem:[#allocation0] ss:$8 sm:$0x3] %vm8, %v7
    %s10 = scalar_lea.vmem [#allocation1], 1
    %s11 = smov 3
    %v12 = vld [vmem:[%s10] ss:$2 sm:%s11]
    %13 = vrot.lane.b32.xlu0 %v12, 64
    %v14 = vpop.permute.xlu0 %13
    %vm15 = vcmask 1048064
    %16 = vst.msk [vmem:[#allocation0] ss:$8 sm:$0x3] %vm15, %v14
    %s18 = sshllo.u32 0, 1
    %v20 = vld [vmem:[#allocation0] sm:%s18]
    %s21 = sshllo.u32 0, 1
    %22 = vst [vmem:[%s1] sm:%s21] %v20
    %s23 = scalar_lea.vmem [#allocation0], 8
    %v24 = vld [vmem:[%s23] sm:%s18]
    %s25 = sshllo.u32 0, 1
    %s26 = scalar_lea.vmem %s1, 1
    %27 = vst [vmem:[%s26] sm:%s25] %v24

// kernel: tile.18
$region0: #{tile.18}
  #allocation0 [shape = 's32[1]{0}', space=sflag, size = 0x4, scoped, tag = 'scoped memory for tile.18']
  %s0 = inlined_call_operand.vmem [shape: f32[32], index: 0, kind: input, shape index: {}]
  %s1 = inlined_call_operand.vmem [shape: f32[4,32], index: 1, kind: output, shape index: {}]
  // Predicated region
  $region2: #{tile.18} parent=0 // pred_check
    _
  $region3: #{tile.18} parent=0 // pred_check_branch
    %3 = sbr.rel (0) target = $region5
  $region4: #{tile.18} parent=0 // pred_region
    _
  $region5: #{tile.18} parent=0 // pred_fallthru
    _
  %v4 = vld [vmem:[%s0] ss:$0 sm:$0xff]
  %5 = vst [vmem:[%s1] sm:$0xf] %v4

// kernel: tile.19
$region0: #{tile.19}
  %s0 = inlined_call_operand.vmem [shape: f32[4,32], index: 0, kind: input, shape index: {}]
  %s1 = inlined_call_operand.vmem [shape: f32[1,128], index: 1, kind: output, shape index: {}]
  $region1: #{tile.19} parent=0
    #allocation0 [shape = 'u8[4096]{0}', space=vmem, size = 0x1000, scoped, tag = 'scoped mem for output reshape']
    #allocation1 [shape = 'u8[4096]{0}', space=vmem, size = 0x1000, scoped, tag = 'scoped mem for input reshape']
    %s3 = sshllo.u32 0, 4
    %v4 = vld [vmem:[%s0] sm:%s3]
    %5 = vst [vmem:[#allocation1] sm:%s3] %v4
    %v6 = vld [vmem:[#allocation1] sm:$0x1]
    %vm7 = vcmask 261120
    %8 = vst.msk [vmem:[#allocation0] sm:$0x1] %vm7, %v6
    %s9 = scalar_lea.vmem [#allocation1], 3
    %v10 = vld [vmem:[%s9] sm:$0x1]
    %11 = vrot.lane.b32.xlu0 %v10, 96
    %v12 = vpop.permute.xlu0 %11
    %vm13 = vcmask 1048320
    %14 = vst.msk [vmem:[#allocation0] sm:$0x1] %vm13, %v12
    %s15 = scalar_lea.vmem [#allocation1], 2
    %v16 = vld [vmem:[%s15] sm:$0x1]
    %17 = vrot.lane.b32.xlu0 %v16, 64
    %v18 = vpop.permute.xlu0 %17
    %vm19 = vcmask 785920
    %20 = vst.msk [vmem:[#allocation0] sm:$0x1] %vm19, %v18
    %s21 = scalar_lea.vmem [#allocation1], 1
    %v22 = vld [vmem:[%s21] sm:$0x1]
    %23 = vrot.lane.b32.xlu0 %v22, 32
    %v24 = vpop.permute.xlu0 %23
    %vm25 = vcmask 523520
    %26 = vst.msk [vmem:[#allocation0] sm:$0x1] %vm25, %v24
    %s28 = sshllo.u32 0, 1
    %v30 = vld [vmem:[#allocation0] sm:%s28]
    %s31 = sshllo.u32 0, 1
    %32 = vst [vmem:[%s1] sm:%s31] %v30

// kernel: feed_forward_module.1
$region0: #{feed_forward_module.1}
  #allocation0 [shape = 'u32[]', space=smem, size = 0x4, offset = 0x4, fixed_abs, tag = 'smem constant byte address 0x4 - core index']
  #allocation1 [shape = 'u32[144,128]{1,0:T(1,128)}', space=vmem, size = 0x12000, scoped, tag = 'internal scratch']
  %s0 = inlined_call_operand.vmem [shape: f32[4,128], index: 0, kind: input, shape index: {}]
  %s1 = inlined_call_operand.vmem [shape: f32[128,128], index: 1, kind: input, shape index: {}]
  %s2 = inlined_call_operand.vmem [shape: f32[128,256], index: 2, kind: input, shape index: {}]
  %s3 = inlined_call_operand.vmem [shape: f32[1,256], index: 3, kind: input, shape index: {}]
  %s4 = inlined_call_operand.vmem [shape: f32[256,128], index: 4, kind: input, shape index: {}]
  %s5 = inlined_call_operand.vmem [shape: f32[1,128], index: 5, kind: input, shape index: {}]
  %s6 = inlined_call_operand.vmem [shape: f32[4,128], index: 6, kind: output, shape index: {}]
  %s7 = sld [smem:[#allocation0]]
  $region34: #{feed_forward_module.1} parent=0
    _
  %s9 = ssub.s32 1, %s7
  %s10 = scalar_select 0, %s9, %s7
  // Predicated region
  $region2: #{feed_forward_module.1} parent=0 // pred_check
    _
  $region3: #{feed_forward_module.1} parent=0 // pred_check_branch
    %12 = sbr.rel (0) target = $region5
  $region4: #{feed_forward_module.1} parent=0 // pred_region
    _
  $region5: #{feed_forward_module.1} parent=0 // pred_fallthru
    _
  // Predicated region
  $region6: #{feed_forward_module.1} parent=0 // pred_check
    _
  $region7: #{feed_forward_module.1} parent=0 // pred_check_branch
    %14 = sbr.rel (0) target = $region9
  $region8: #{feed_forward_module.1} parent=0 // pred_region
    _
  $region9: #{feed_forward_module.1} parent=0 // pred_fallthru
    _
  // Predicated region
  $region10: #{feed_forward_module.1} parent=0 // pred_check
    _
  $region11: #{feed_forward_module.1} parent=0 // pred_check_branch
    %16 = sbr.rel (0) target = $region13
  $region12: #{feed_forward_module.1} parent=0 // pred_region
    _
  $region13: #{feed_forward_module.1} parent=0 // pred_fallthru
    _
  // Predicated region
  $region14: #{feed_forward_module.1} parent=0 // pred_check
    _
  $region15: #{feed_forward_module.1} parent=0 // pred_check_branch
    %18 = sbr.rel (0) target = $region17
  $region16: #{feed_forward_module.1} parent=0 // pred_region
    _
  $region17: #{feed_forward_module.1} parent=0 // pred_fallthru
    _
  // Predicated region
  $region18: #{feed_forward_module.1} parent=0 // pred_check
    _
  $region19: #{feed_forward_module.1} parent=0 // pred_check_branch
    %20 = sbr.rel (0) target = $region21
  $region20: #{feed_forward_module.1} parent=0 // pred_region
    _
  $region21: #{feed_forward_module.1} parent=0 // pred_fallthru
    _
  // Predicated region
  $region22: #{feed_forward_module.1} parent=0 // pred_check
    _
  $region23: #{feed_forward_module.1} parent=0 // pred_check_branch
    %22 = sbr.rel (0) target = $region25
  $region24: #{feed_forward_module.1} parent=0 // pred_region
    _
  $region25: #{feed_forward_module.1} parent=0 // pred_fallthru
    _
  %v23 = vld [vmem:[%s0] sm:$0xf]
  %v24 = vld [vmem:[%s1] sm:$0xff]
  %v25 = vld [vmem:[%s1 + $0x8] sm:$0xff]
  %v26 = vld [vmem:[%s1 + $0x10] sm:$0xff]
  %v27 = vld [vmem:[%s1 + $0x18] sm:$0xff]
  %v28 = vld [vmem:[%s1 + $0x20] sm:$0xff]
  %v29 = vld [vmem:[%s1 + $0x28] sm:$0xff]
  %v30 = vld [vmem:[%s1 + $0x30] sm:$0xff]
  %v31 = vld [vmem:[%s1 + $0x38] sm:$0xff]
  %v32 = vld [vmem:[%s1 + $0x40] sm:$0xff]
  %v33 = vld [vmem:[%s1 + $0x48] sm:$0xff]
  %v34 = vld [vmem:[%s1 + $0x50] sm:$0xff]
  %v35 = vld [vmem:[%s1 + $0x58] sm:$0xff]
  %v36 = vld [vmem:[%s1 + $0x60] sm:$0xff]
  %v37 = vld [vmem:[%s1 + $0x68] sm:$0xff]
  %v38 = vld [vmem:[%s1 + $0x70] sm:$0xff]
  %v39 = vld [vmem:[%s1 + $0x78] sm:$0xff]
  %40 = vmatprep.subr.mxu0 0.0
  %41 = vmatpush1.msra.mxu0 %v24
  %42 = vmatprep.subr.mxu0 0.0
  %43 = vmatpush1.msra.mxu0 %v25
  %44 = vmatprep.subr.mxu0 0.0
  %45 = vmatpush1.msra.mxu0 %v26
  %46 = vmatprep.subr.mxu0 0.0
  %47 = vmatpush1.msra.mxu0 %v27
  %48 = vmatprep.subr.mxu0 0.0
  %49 = vmatpush1.msra.mxu0 %v28
  %50 = vmatprep.subr.mxu0 0.0
  %51 = vmatpush1.msra.mxu0 %v29
  %52 = vmatprep.subr.mxu0 0.0
  %53 = vmatpush1.msra.mxu0 %v30
  %54 = vmatprep.subr.mxu0 0.0
  %55 = vmatpush1.msra.mxu0 %v31
  %56 = vmatprep.subr.mxu0 0.0
  %57 = vmatpush1.msra.mxu0 %v32
  %58 = vmatprep.subr.mxu0 0.0
  %59 = vmatpush1.msra.mxu0 %v33
  %60 = vmatprep.subr.mxu0 0.0
  %61 = vmatpush1.msra.mxu0 %v34
  %62 = vmatprep.subr.mxu0 0.0
  %63 = vmatpush1.msra.mxu0 %v35
  %64 = vmatprep.subr.mxu0 0.0
  %65 = vmatpush1.msra.mxu0 %v36
  %66 = vmatprep.subr.mxu0 0.0
  %67 = vmatpush1.msra.mxu0 %v37
  %68 = vmatprep.subr.mxu0 0.0
  %69 = vmatpush1.msra.mxu0 %v38
  %70 = vmatprep.subr.mxu0 0.0
  %71 = vmatpush1.msra.mxu0 %v39
  %72 = vmatprep.subr.mxu0 0.0
  %73 = vmatpush1.msra.mxu0 0.0
  %74 = vmatprep.subr.mxu0 0.0
  %75 = vmatpush1.msra.mxu0 0.0
  %76 = vmatprep.subr.mxu0 0.0
  %77 = vmatpush1.msra.mxu0 0.0
  %78 = vmatprep.subr.mxu0 0.0
  %79 = vmatpush1.msra.mxu0 0.0
  %80 = vmatprep.subr.mxu0 0.0
  %81 = vmatpush1.msra.mxu0 0.0
  %82 = vmatprep.subr.mxu0 0.0
  %83 = vmatpush1.msra.mxu0 0.0
  %84 = vmatprep.subr.mxu0 0.0
  %85 = vmatpush1.msra.mxu0 0.0
  %86 = vmatprep.subr.mxu0 0.0
  %87 = vmatpush1.msra.mxu0 0.0
  %88 = vmatprep.subr.mxu0 0.0
  %89 = vmatpush1.msra.mxu0 0.0
  %90 = vmatprep.subr.mxu0 0.0
  %91 = vmatpush1.msra.mxu0 0.0
  %92 = vmatprep.subr.mxu0 0.0
  %93 = vmatpush1.msra.mxu0 0.0
  %94 = vmatprep.subr.mxu0 0.0
  %95 = vmatpush1.msra.mxu0 0.0
  %96 = vmatprep.subr.mxu0 0.0
  %97 = vmatpush1.msra.mxu0 0.0
  %98 = vmatprep.subr.mxu0 0.0
  %99 = vmatpush1.msra.mxu0 0.0
  %100 = vmatprep.subr.mxu0 0.0
  %101 = vmatpush1.msra.mxu0 0.0
  %102 = vmatprep.subr.mxu0 0.0
  %103 = vmatpush1.msra.mxu0 0.0
  %104 = vmatprep.mubr.f32.mxu0 0.0
  %105 = vmatmul.mubr.f32.gmra.mrb[0].mxu0 %v23
  %v106 = vpop.f32.mrb[0].mxu0
  %v107 = vadd.f32 0.0, %v106
  %v108 = vpop.f32.mrb[0].mxu0
  %109 = vdwg.mxu0
  %v110 = vsub.f32 %v23, %v107
  %v111 = vmul.f32 %v110, %v110
  %112 = vmatprep.subr.mxu0 0.0
  %113 = vmatpush1.msra.mxu0 %v24
  %114 = vmatprep.subr.mxu0 0.0
  %115 = vmatpush1.msra.mxu0 %v25
  %116 = vmatprep.subr.mxu0 0.0
  %117 = vmatpush1.msra.mxu0 %v26
  %118 = vmatprep.subr.mxu0 0.0
  %119 = vmatpush1.msra.mxu0 %v27
  %120 = vmatprep.subr.mxu0 0.0
  %121 = vmatpush1.msra.mxu0 %v28
  %122 = vmatprep.subr.mxu0 0.0
  %123 = vmatpush1.msra.mxu0 %v29
  %124 = vmatprep.subr.mxu0 0.0
  %125 = vmatpush1.msra.mxu0 %v30
  %126 = vmatprep.subr.mxu0 0.0
  %127 = vmatpush1.msra.mxu0 %v31
  %128 = vmatprep.subr.mxu0 0.0
  %129 = vmatpush1.msra.mxu0 %v32
  %130 = vmatprep.subr.mxu0 0.0
  %131 = vmatpush1.msra.mxu0 %v33
  %132 = vmatprep.subr.mxu0 0.0
  %133 = vmatpush1.msra.mxu0 %v34
  %134 = vmatprep.subr.mxu0 0.0
  %135 = vmatpush1.msra.mxu0 %v35
  %136 = vmatprep.subr.mxu0 0.0
  %137 = vmatpush1.msra.mxu0 %v36
  %138 = vmatprep.subr.mxu0 0.0
  %139 = vmatpush1.msra.mxu0 %v37
  %140 = vmatprep.subr.mxu0 0.0
  %141 = vmatpush1.msra.mxu0 %v38
  %142 = vmatprep.subr.mxu0 0.0
  %143 = vmatpush1.msra.mxu0 %v39
  %144 = vmatprep.subr.mxu0 0.0
  %145 = vmatpush1.msra.mxu0 0.0
  %146 = vmatprep.subr.mxu0 0.0
  %147 = vmatpush1.msra.mxu0 0.0
  %148 = vmatprep.subr.mxu0 0.0
  %149 = vmatpush1.msra.mxu0 0.0
  %150 = vmatprep.subr.mxu0 0.0
  %151 = vmatpush1.msra.mxu0 0.0
  %152 = vmatprep.subr.mxu0 0.0
  %153 = vmatpush1.msra.mxu0 0.0
  %154 = vmatprep.subr.mxu0 0.0
  %155 = vmatpush1.msra.mxu0 0.0
  %156 = vmatprep.subr.mxu0 0.0
  %157 = vmatpush1.msra.mxu0 0.0
  %158 = vmatprep.subr.mxu0 0.0
  %159 = vmatpush1.msra.mxu0 0.0
  %160 = vmatprep.subr.mxu0 0.0
  %161 = vmatpush1.msra.mxu0 0.0
  %162 = vmatprep.subr.mxu0 0.0
  %163 = vmatpush1.msra.mxu0 0.0
  %164 = vmatprep.subr.mxu0 0.0
  %165 = vmatpush1.msra.mxu0 0.0
  %166 = vmatprep.subr.mxu0 0.0
  %167 = vmatpush1.msra.mxu0 0.0
  %168 = vmatprep.subr.mxu0 0.0
  %169 = vmatpush1.msra.mxu0 0.0
  %170 = vmatprep.subr.mxu0 0.0
  %171 = vmatpush1.msra.mxu0 0.0
  %172 = vmatprep.subr.mxu0 0.0
  %173 = vmatpush1.msra.mxu0 0.0
  %174 = vmatprep.subr.mxu0 0.0
  %175 = vmatpush1.msra.mxu0 0.0
  %176 = vmatprep.mubr.f32.mxu0 0.0
  %177 = vmatmul.mubr.f32.gmra.mrb[0].mxu0 %v111
  %v178 = vpop.f32.mrb[0].mxu0
  %v179 = vadd.f32 1e-05, %v178
  %v180 = vpop.f32.mrb[0].mxu0
  %181 = vdwg.mxu0
  %v182 = vrsqrt.pop %v179
  %v183 = vmul.f32 %v110, %v182
  %v184 = vld [vmem:[%s2] sm:$0xff]
  %v185 = vld [vmem:[%s2 + $0x8] sm:$0xff]
  %v186 = vld [vmem:[%s2 + $0x10] sm:$0xff]
  %v187 = vld [vmem:[%s2 + $0x18] sm:$0xff]
  %v188 = vld [vmem:[%s2 + $0x20] sm:$0xff]
  %v189 = vld [vmem:[%s2 + $0x28] sm:$0xff]
  %v190 = vld [vmem:[%s2 + $0x30] sm:$0xff]
  %v191 = vld [vmem:[%s2 + $0x38] sm:$0xff]
  %v192 = vld [vmem:[%s2 + $0x40] sm:$0xff]
  %v193 = vld [vmem:[%s2 + $0x48] sm:$0xff]
  %v194 = vld [vmem:[%s2 + $0x50] sm:$0xff]
  %v195 = vld [vmem:[%s2 + $0x58] sm:$0xff]
  %v196 = vld [vmem:[%s2 + $0x60] sm:$0xff]
  %v197 = vld [vmem:[%s2 + $0x68] sm:$0xff]
  %v198 = vld [vmem:[%s2 + $0x70] sm:$0xff]
  %v199 = vld [vmem:[%s2 + $0x78] sm:$0xff]
  %v200 = vld [vmem:[%s2 + $0x80] sm:$0xff]
  %v201 = vld [vmem:[%s2 + $0x88] sm:$0xff]
  %v202 = vld [vmem:[%s2 + $0x90] sm:$0xff]
  %v203 = vld [vmem:[%s2 + $0x98] sm:$0xff]
  %v204 = vld [vmem:[%s2 + $0xa0] sm:$0xff]
  %v205 = vld [vmem:[%s2 + $0xa8] sm:$0xff]
  %v206 = vld [vmem:[%s2 + $0xb0] sm:$0xff]
  %v207 = vld [vmem:[%s2 + $0xb8] sm:$0xff]
  %v208 = vld [vmem:[%s2 + $0xc0] sm:$0xff]
  %v209 = vld [vmem:[%s2 + $0xc8] sm:$0xff]
  %v210 = vld [vmem:[%s2 + $0xd0] sm:$0xff]
  %v211 = vld [vmem:[%s2 + $0xd8] sm:$0xff]
  %v212 = vld [vmem:[%s2 + $0xe0] sm:$0xff]
  %v213 = vld [vmem:[%s2 + $0xe8] sm:$0xff]
  %v214 = vld [vmem:[%s2 + $0xf0] sm:$0xff]
  %v215 = vld [vmem:[%s2 + $0xf8] sm:$0xff]
  %v216 = vld [vmem:[%s3] sm:$0x3]
  %v218 = vlaneseq
  %v219 = vshrl.u32 %v218, 7
  %v220 = vsub.s32 0, %v219
  %v221 = vrot.slane %v216, %v220
  %v222 = vlaneseq
  %v223 = vshrl.u32 %v222, 7
  %v224 = vsub.s32 1, %v223
  %v225 = vrot.slane %v216, %v224
  %228 = vmatprep.subr.mxu0 %v185
  %229 = vmatpush1.msra.mxu0 %v184
  %230 = vmatprep.subr.mxu0 %v187
  %231 = vmatpush1.msra.mxu0 %v186
  %232 = vmatprep.subr.mxu0 %v189
  %233 = vmatpush1.msra.mxu0 %v188
  %234 = vmatprep.subr.mxu0 %v191
  %235 = vmatpush1.msra.mxu0 %v190
  %236 = vmatprep.subr.mxu0 %v193
  %237 = vmatpush1.msra.mxu0 %v192
  %238 = vmatprep.subr.mxu0 %v195
  %239 = vmatpush1.msra.mxu0 %v194
  %240 = vmatprep.subr.mxu0 %v197
  %241 = vmatpush1.msra.mxu0 %v196
  %242 = vmatprep.subr.mxu0 %v199
  %243 = vmatpush1.msra.mxu0 %v198
  %244 = vmatprep.subr.mxu0 %v201
  %245 = vmatpush1.msra.mxu0 %v200
  %246 = vmatprep.subr.mxu0 %v203
  %247 = vmatpush1.msra.mxu0 %v202
  %248 = vmatprep.subr.mxu0 %v205
  %249 = vmatpush1.msra.mxu0 %v204
  %250 = vmatprep.subr.mxu0 %v207
  %251 = vmatpush1.msra.mxu0 %v206
  %252 = vmatprep.subr.mxu0 %v209
  %253 = vmatpush1.msra.mxu0 %v208
  %254 = vmatprep.subr.mxu0 %v211
  %255 = vmatpush1.msra.mxu0 %v210
  %256 = vmatprep.subr.mxu0 %v213
  %257 = vmatpush1.msra.mxu0 %v212
  %258 = vmatprep.subr.mxu0 %v215
  %259 = vmatpush1.msra.mxu0 %v214
  %260 = vmatprep.subr.mxu0 0.0
  %261 = vmatpush1.msra.mxu0 0.0
  %262 = vmatprep.subr.mxu0 0.0
  %263 = vmatpush1.msra.mxu0 0.0
  %264 = vmatprep.subr.mxu0 0.0
  %265 = vmatpush1.msra.mxu0 0.0
  %266 = vmatprep.subr.mxu0 0.0
  %267 = vmatpush1.msra.mxu0 0.0
  %268 = vmatprep.subr.mxu0 0.0
  %269 = vmatpush1.msra.mxu0 0.0
  %270 = vmatprep.subr.mxu0 0.0
  %271 = vmatpush1.msra.mxu0 0.0
  %272 = vmatprep.subr.mxu0 0.0
  %273 = vmatpush1.msra.mxu0 0.0
  %274 = vmatprep.subr.mxu0 0.0
  %275 = vmatpush1.msra.mxu0 0.0
  %276 = vmatprep.subr.mxu0 0.0
  %277 = vmatpush1.msra.mxu0 0.0
  %278 = vmatprep.subr.mxu0 0.0
  %279 = vmatpush1.msra.mxu0 0.0
  %280 = vmatprep.subr.mxu0 0.0
  %281 = vmatpush1.msra.mxu0 0.0
  %282 = vmatprep.subr.mxu0 0.0
  %283 = vmatpush1.msra.mxu0 0.0
  %284 = vmatprep.subr.mxu0 0.0
  %285 = vmatpush1.msra.mxu0 0.0
  %286 = vmatprep.subr.mxu0 0.0
  %287 = vmatpush1.msra.mxu0 0.0
  %288 = vmatprep.subr.mxu0 0.0
  %289 = vmatpush1.msra.mxu0 0.0
  %290 = vmatprep.subr.mxu0 0.0
  %291 = vmatpush1.msra.mxu0 0.0
  %292 = vmatprep.mubr.f32.mxu0 0.0
  %293 = vmatmul.mubr.f32.gmra.mrb[0].mxu0 %v183
  %v294 = vpop.f32.mrb[0].mxu0
  %v295 = vadd.f32 %v221, %v294
  %v296 = vpop.f32.mrb[0].mxu0
  %v297 = vadd.f32 %v225, %v296
  %298 = vdwg.mxu0
  %v299 = vmax.f32 %v295, 0.0
  %v300 = vmax.f32 %v297, 0.0
  %v301 = vld [vmem:[%s4] sm:$0xff]
  %v302 = vld [vmem:[%s4 + $0x8] sm:$0xff]
  %v303 = vld [vmem:[%s4 + $0x10] sm:$0xff]
  %v304 = vld [vmem:[%s4 + $0x18] sm:$0xff]
  %v305 = vld [vmem:[%s4 + $0x20] sm:$0xff]
  %v306 = vld [vmem:[%s4 + $0x28] sm:$0xff]
  %v307 = vld [vmem:[%s4 + $0x30] sm:$0xff]
  %v308 = vld [vmem:[%s4 + $0x38] sm:$0xff]
  %v309 = vld [vmem:[%s4 + $0x40] sm:$0xff]
  %v310 = vld [vmem:[%s4 + $0x48] sm:$0xff]
  %v311 = vld [vmem:[%s4 + $0x50] sm:$0xff]
  %v312 = vld [vmem:[%s4 + $0x58] sm:$0xff]
  %v313 = vld [vmem:[%s4 + $0x60] sm:$0xff]
  %v314 = vld [vmem:[%s4 + $0x68] sm:$0xff]
  %v315 = vld [vmem:[%s4 + $0x70] sm:$0xff]
  %v316 = vld [vmem:[%s4 + $0x78] sm:$0xff]
  %v317 = vld [vmem:[%s4 + $0x80] sm:$0xff]
  %v318 = vld [vmem:[%s4 + $0x88] sm:$0xff]
  %v319 = vld [vmem:[%s4 + $0x90] sm:$0xff]
  %v320 = vld [vmem:[%s4 + $0x98] sm:$0xff]
  %v321 = vld [vmem:[%s4 + $0xa0] sm:$0xff]
  %v322 = vld [vmem:[%s4 + $0xa8] sm:$0xff]
  %v323 = vld [vmem:[%s4 + $0xb0] sm:$0xff]
  %v324 = vld [vmem:[%s4 + $0xb8] sm:$0xff]
  %v325 = vld [vmem:[%s4 + $0xc0] sm:$0xff]
  %v326 = vld [vmem:[%s4 + $0xc8] sm:$0xff]
  %v327 = vld [vmem:[%s4 + $0xd0] sm:$0xff]
  %v328 = vld [vmem:[%s4 + $0xd8] sm:$0xff]
  %v329 = vld [vmem:[%s4 + $0xe0] sm:$0xff]
  %v330 = vld [vmem:[%s4 + $0xe8] sm:$0xff]
  %v331 = vld [vmem:[%s4 + $0xf0] sm:$0xff]
  %v332 = vld [vmem:[%s4 + $0xf8] sm:$0xff]
  %v333 = vld [vmem:[%s5] sm:$0x1]
  %v335 = vlaneseq
  %v336 = vshrl.u32 %v335, 7
  %v337 = vsub.s32 0, %v336
  %v338 = vrot.slane %v333, %v337
  %340 = vmatprep.subr.mxu0 0.0
  %341 = vmatpush1.msra.mxu0 %v301
  %342 = vmatprep.subr.mxu0 0.0
  %343 = vmatpush1.msra.mxu0 %v302
  %344 = vmatprep.subr.mxu0 0.0
  %345 = vmatpush1.msra.mxu0 %v303
  %346 = vmatprep.subr.mxu0 0.0
  %347 = vmatpush1.msra.mxu0 %v304
  %348 = vmatprep.subr.mxu0 0.0
  %349 = vmatpush1.msra.mxu0 %v305
  %350 = vmatprep.subr.mxu0 0.0
  %351 = vmatpush1.msra.mxu0 %v306
  %352 = vmatprep.subr.mxu0 0.0
  %353 = vmatpush1.msra.mxu0 %v307
  %354 = vmatprep.subr.mxu0 0.0
  %355 = vmatpush1.msra.mxu0 %v308
  %356 = vmatprep.subr.mxu0 0.0
  %357 = vmatpush1.msra.mxu0 %v309
  %358 = vmatprep.subr.mxu0 0.0
  %359 = vmatpush1.msra.mxu0 %v310
  %360 = vmatprep.subr.mxu0 0.0
  %361 = vmatpush1.msra.mxu0 %v311
  %362 = vmatprep.subr.mxu0 0.0
  %363 = vmatpush1.msra.mxu0 %v312
  %364 = vmatprep.subr.mxu0 0.0
  %365 = vmatpush1.msra.mxu0 %v313
  %366 = vmatprep.subr.mxu0 0.0
  %367 = vmatpush1.msra.mxu0 %v314
  %368 = vmatprep.subr.mxu0 0.0
  %369 = vmatpush1.msra.mxu0 %v315
  %370 = vmatprep.subr.mxu0 0.0
  %371 = vmatpush1.msra.mxu0 %v316
  %372 = vmatprep.subr.mxu0 0.0
  %373 = vmatpush1.msra.mxu0 %v317
  %374 = vmatprep.subr.mxu0 0.0
  %375 = vmatpush1.msra.mxu0 %v318
  %376 = vmatprep.subr.mxu0 0.0
  %377 = vmatpush1.msra.mxu0 %v319
  %378 = vmatprep.subr.mxu0 0.0
  %379 = vmatpush1.msra.mxu0 %v320
  %380 = vmatprep.subr.mxu0 0.0
  %381 = vmatpush1.msra.mxu0 %v321
  %382 = vmatprep.subr.mxu0 0.0
  %383 = vmatpush1.msra.mxu0 %v322
  %384 = vmatprep.subr.mxu0 0.0
  %385 = vmatpush1.msra.mxu0 %v323
  %386 = vmatprep.subr.mxu0 0.0
  %387 = vmatpush1.msra.mxu0 %v324
  %388 = vmatprep.subr.mxu0 0.0
  %389 = vmatpush1.msra.mxu0 %v325
  %390 = vmatprep.subr.mxu0 0.0
  %391 = vmatpush1.msra.mxu0 %v326
  %392 = vmatprep.subr.mxu0 0.0
  %393 = vmatpush1.msra.mxu0 %v327
  %394 = vmatprep.subr.mxu0 0.0
  %395 = vmatpush1.msra.mxu0 %v328
  %396 = vmatprep.subr.mxu0 0.0
  %397 = vmatpush1.msra.mxu0 %v329
  %398 = vmatprep.subr.mxu0 0.0
  %399 = vmatpush1.msra.mxu0 %v330
  %400 = vmatprep.subr.mxu0 0.0
  %401 = vmatpush1.msra.mxu0 %v331
  %402 = vmatprep.subr.mxu0 0.0
  %403 = vmatpush1.msra.mxu0 %v332
  %404 = vmatprep.mubr.f32.mxu0 %v300
  %405 = vmatmul.mubr.f32.gmra.mrb[0].mxu0 %v299
  %v406 = vpop.f32.mrb[0].mxu0
  %v407 = vadd.f32 %v338, %v406
  %v408 = vpop.f32.mrb[0].mxu0
  %409 = vdwg.mxu0
  %v410 = vadd.f32 %v407, %v23
  %411 = vst [vmem:[%s6] sm:$0xf] %v410
  // Predicated region
  $region26: #{feed_forward_module.1} parent=0 // pred_check
    _
  $region27: #{feed_forward_module.1} parent=0 // pred_check_branch
    %413 = sbr.rel (0) target = $region29
  $region28: #{feed_forward_module.1} parent=0 // pred_region
    _
  $region29: #{feed_forward_module.1} parent=0 // pred_fallthru
    _
  // Predicated region
  $region30: #{feed_forward_module.1} parent=0 // pred_check
    _
  $region31: #{feed_forward_module.1} parent=0 // pred_check_branch
    %415 = sbr.rel (0) target = $region33
  $region32: #{feed_forward_module.1} parent=0 // pred_region
    _
  $region33: #{feed_forward_module.1} parent=0 // pred_fallthru
    _

</llo_original>
